<compile_context>
chip_gen: v5e
topology: v5e:2x2
jax: 0.10.0
libtpu: 0.0.40
codegen_flags: <defaults>
</compile_context>

<pallas_src>
import functools

import jax
import jax.numpy as jnp
from jax.experimental import pallas as pl
from jax.experimental.pallas import tpu as pltpu


def _normalized_model_kernel(x_ref, scale_ref, bias_ref, w_ref, b_ref,
                             out_ref, acc_ref, *, inv_hw):
    """Fused normalize + (avg-pool -> linear) forward, tiled over (N, HW).

    x_ref:     (n_tile, C, hw_tile) f32   input tile (spatial collapsed to lanes)
    scale_ref: (C, 1)               f32   1/std   (per-channel)
    bias_ref:  (C, 1)               f32   -mean/std
    w_ref:     (C, K)               f32   linear head weight
    b_ref:     (1, K)               f32   linear head bias
    out_ref:   (n_tile, K)          f32   logits (same block across HW axis)
    acc_ref:   (n_tile, C)          f32   VMEM scratch: partial spatial sums
    """
    j = pl.program_id(1)  # HW (reduction) grid axis, innermost

    @pl.when(j == 0)
    def _init():
        acc_ref[...] = jnp.zeros_like(acc_ref)

    # (x - mean)/std rewritten as x*scale + bias -> pure VALU, no EUP divide.
    x = x_ref[...]                                        # (n_tile, C, hw_tile)
    normalized = x * scale_ref[...] + bias_ref[...]       # (C,1) broadcasts

    # Partial spatial sum for the global average pool (cross-lane reduce on XLU,
    # separate slot from the VPU elementwise work above).
    acc_ref[...] += jnp.sum(normalized, axis=-1)          # (n_tile, C)

    @pl.when(j == pl.num_programs(1) - 1)
    def _finalize():
        pooled = acc_ref[...] * inv_hw                    # (n_tile, C)
        logits = jnp.dot(pooled, w_ref[...],
                         preferred_element_type=jnp.float32)
        out_ref[...] = logits + b_ref[...]


def _largest_divisor_tile(total, cap, multiple=1):
    """Largest t <= cap with total % t == 0 and t % multiple == 0.

    Falls back to `total` (single full block) if no such divisor exists, which
    is always a legal block shape.
    """
    if total <= cap:
        return total
    t = (cap // multiple) * multiple
    while t >= multiple:
        if total % t == 0:
            return t
        t -= multiple
    return total


def normalized_model_forward(x_nchw, mean_c, std_c, w_ck, b_k,
                             n_tile=None, hw_tile=None):
    """x_nchw: (N, C, H, W) f32; mean_c/std_c: (C,); w_ck: (C, K); b_k: (K,)."""
    N, C, H, W = x_nchw.shape
    K = w_ck.shape[1]
    HW = H * W

    # Collapse spatial dims onto TPU lanes; channels sit on sublanes, batch is
    # the leading (parallel) grid dimension. Pure glue reshape in the wrapper.
    x3 = x_nchw.reshape(N, C, HW)

    # Host-side precompute of the affine normalization parameters (tiny (C,)
    # arrays): normalized = x * scale + bias  ==  (x - mean) / std.
    scale = (1.0 / std_c).reshape(C, 1).astype(jnp.float32)
    bias = (-mean_c / std_c).reshape(C, 1).astype(jnp.float32)
    b2 = b_k.reshape(1, K).astype(jnp.float32)

    if n_tile is None:
        n_tile = _largest_divisor_tile(N, 8)
    if hw_tile is None:
        # Keep each input block <= ~2 MiB so double-buffered blocks comfortably
        # fit the default scoped VMEM on v5e/v6e/v7x; lane width stays >= 128.
        max_lanes = max(128, (2 * 1024 * 1024) // (n_tile * C * 4))
        hw_tile = _largest_divisor_tile(HW, max_lanes, multiple=128)

    assert N % n_tile == 0 and HW % hw_tile == 0
    grid = (N // n_tile, HW // hw_tile)  # reduction (HW) axis last

    kernel = functools.partial(_normalized_model_kernel, inv_hw=1.0 / HW)

    logits = pl.pallas_call(
        kernel,
        grid=grid,
        in_specs=[
            pl.BlockSpec((n_tile, C, hw_tile), lambda i, j: (i, 0, j)),
            pl.BlockSpec((C, 1), lambda i, j: (0, 0)),
            pl.BlockSpec((C, 1), lambda i, j: (0, 0)),
            pl.BlockSpec((C, K), lambda i, j: (0, 0)),
            pl.BlockSpec((1, K), lambda i, j: (0, 0)),
        ],
        # Same output block across the HW axis -> accumulator pattern; the
        # normalized tensor itself is never written back to HBM.
        out_specs=pl.BlockSpec((n_tile, K), lambda i, j: (i, 0)),
        out_shape=jax.ShapeDtypeStruct((N, K), jnp.float32),
        scratch_shapes=[pltpu.VMEM((n_tile, C), jnp.float32)],
        compiler_params=pltpu.CompilerParams(
            dimension_semantics=("parallel", "arbitrary")),
    )(x3, scale, bias, w_ck, b2)

    return logits


def reference_forward(x_nchw, mean_c, std_c, w_ck, b_k):
    """Pure-JAX reference mirroring the PyTorch module exactly."""
    normalized = (x_nchw - mean_c[None, :, None, None]) / std_c[None, :, None, None]
    pooled = jnp.mean(normalized, axis=(2, 3))
    return pooled @ w_ck + b_k


if __name__ == "__main__":
    key = jax.random.PRNGKey(0)
    N, C, H, W, K = 2, 4, 16, 16, 8

    k_x, k_w, k_b = jax.random.split(key, 3)
    x = jax.random.normal(k_x, (N, C, H, W), dtype=jnp.float32)

    # Deterministic "dataset statistics" (fixed buffers, no grad in PyTorch).
    mean = jnp.array([0.485, 0.456, 0.406, 0.5][:C], dtype=jnp.float32)
    std = jnp.array([0.229, 0.224, 0.225, 0.25][:C], dtype=jnp.float32)

    # Deterministic inner-model parameters (avg-pool + linear head).
    w = 0.1 * jax.random.normal(k_w, (C, K), dtype=jnp.float32)
    b = 0.01 * jax.random.normal(k_b, (K,), dtype=jnp.float32)

    logits_ref = reference_forward(x, mean, std, w, b)

    # Auto-tiled path (single HW step at these toy shapes).
    logits_auto = normalized_model_forward(x, mean, std, w, b)
    jax.block_until_ready(logits_auto)
    assert jnp.allclose(logits_auto, logits_ref, atol=1e-4, rtol=1e-5)

    # Explicitly tiled path: exercises the multi-step HW accumulation and the
    # parallel batch grid axis (grid = (2, 2)).
    logits_tiled = normalized_model_forward(x, mean, std, w, b,
                                            n_tile=1, hw_tile=128)
    jax.block_until_ready(logits_tiled)
    assert jnp.allclose(logits_tiled, logits_ref, atol=1e-4, rtol=1e-5)

    print("KERNEL_OK")
</pallas_src>

<mosaic_0001>
module attributes {stable_mosaic.version = 11 : i64} {
  func.func @_normalized_model_kernel(%arg0: i32, %arg1: i32, %arg2: memref<2x4x256xf32, #tpu.memory_space<vmem>>, %arg3: memref<4x1xf32, #tpu.memory_space<vmem>>, %arg4: memref<4x1xf32, #tpu.memory_space<vmem>>, %arg5: memref<4x8xf32, #tpu.memory_space<vmem>>, %arg6: memref<1x8xf32, #tpu.memory_space<vmem>>, %arg7: memref<2x8xf32, #tpu.memory_space<vmem>>, %arg8: memref<2x4xf32, #tpu.memory_space<vmem>>) attributes {dimension_semantics = [#tpu.dimension_semantics<parallel>, #tpu.dimension_semantics<arbitrary>], iteration_bounds = array<i64: 1, 1>, scalar_prefetch = 0 : i64, scratch_operands = 1 : i64, tpu.core_type = #tpu.core_type<tc>, window_params = [{transform_indices = @transform_0, window_bounds = array<i64: 2, 4, 256>}, {pipeline_mode = #tpu.pipeline_mode<synchronous>, transform_indices = @transform_1, window_bounds = array<i64: 4, 1>}, {pipeline_mode = #tpu.pipeline_mode<synchronous>, transform_indices = @transform_2, window_bounds = array<i64: 4, 1>}, {pipeline_mode = #tpu.pipeline_mode<synchronous>, transform_indices = @transform_3, window_bounds = array<i64: 4, 8>}, {pipeline_mode = #tpu.pipeline_mode<synchronous>, transform_indices = @transform_4, window_bounds = array<i64: 1, 8>}, {transform_indices = @transform_5, window_bounds = array<i64: 2, 8>}]} {
    %c0_i32 = arith.constant 0 : i32
    %0 = arith.cmpi eq, %arg1, %c0_i32 : i32
    %1 = arith.extui %0 : i1 to i32
    %c0_i32_0 = arith.constant 0 : i32
    %2 = arith.cmpi ne, %1, %c0_i32_0 : i32
    scf.if %2 {
      %cst_13 = arith.constant 0.000000e+00 : f32
      %19 = vector.broadcast %cst_13 : f32 to vector<2x4xf32>
      %c0_14 = arith.constant 0 : index
      %c0_15 = arith.constant 0 : index
      %20 = vector.load %arg8[%c0_14, %c0_15] : memref<2x4xf32, #tpu.memory_space<vmem>>, vector<2x4xf32>
      tpu.vector_store %arg8[%c0_14, %c0_15], %19 {strides = array<i32>} : memref<2x4xf32, #tpu.memory_space<vmem>>, vector<2x4xf32>,
    } else {
    }
    %c0 = arith.constant 0 : index
    %c0_1 = arith.constant 0 : index
    %c0_2 = arith.constant 0 : index
    %3 = vector.load %arg2[%c0, %c0_1, %c0_2] : memref<2x4x256xf32, #tpu.memory_space<vmem>>, vector<2x4x256xf32>
    %c0_3 = arith.constant 0 : index
    %c0_4 = arith.constant 0 : index
    %4 = vector.load %arg3[%c0_3, %c0_4] : memref<4x1xf32, #tpu.memory_space<vmem>>, vector<4x1xf32>
    %5 = vector.shape_cast %4 : vector<4x1xf32> to vector<1x4x1xf32>
    %6 = vector.broadcast %5 : vector<1x4x1xf32> to vector<2x4x256xf32>
    %7 = arith.mulf %3, %6 : vector<2x4x256xf32>
    %c0_5 = arith.constant 0 : index
    %c0_6 = arith.constant 0 : index
    %8 = vector.load %arg4[%c0_5, %c0_6] : memref<4x1xf32, #tpu.memory_space<vmem>>, vector<4x1xf32>
    %9 = vector.shape_cast %8 : vector<4x1xf32> to vector<1x4x1xf32>
    %10 = vector.broadcast %9 : vector<1x4x1xf32> to vector<2x4x256xf32>
    %11 = arith.addf %7, %10 : vector<2x4x256xf32>
    %c0_7 = arith.constant 0 : index
    %c0_8 = arith.constant 0 : index
    %12 = vector.load %arg8[%c0_7, %c0_8] : memref<2x4xf32, #tpu.memory_space<vmem>>, vector<2x4xf32>
    %cst = arith.constant dense<0.000000e+00> : vector<2x4xf32>
    %13 = vector.multi_reduction <add>, %11, %cst [2] : vector<2x4x256xf32> to vector<2x4xf32>
    %14 = arith.addf %12, %13 : vector<2x4xf32>
    %c0_9 = arith.constant 0 : index
    %c0_10 = arith.constant 0 : index
    %15 = vector.load %arg8[%c0_9, %c0_10] : memref<2x4xf32, #tpu.memory_space<vmem>>, vector<2x4xf32>
    tpu.vector_store %arg8[%c0_9, %c0_10], %14 {strides = array<i32>} : memref<2x4xf32, #tpu.memory_space<vmem>>, vector<2x4xf32>,
    %c0_i32_11 = arith.constant 0 : i32
    %16 = arith.cmpi eq, %arg1, %c0_i32_11 : i32
    %17 = arith.extui %16 : i1 to i32
    %c0_i32_12 = arith.constant 0 : i32
    %18 = arith.cmpi ne, %17, %c0_i32_12 : i32
    scf.if %18 {
      %c0_13 = arith.constant 0 : index
      %c0_14 = arith.constant 0 : index
      %19 = vector.load %arg8[%c0_13, %c0_14] : memref<2x4xf32, #tpu.memory_space<vmem>>, vector<2x4xf32>
      %cst_15 = arith.constant 3.906250e-03 : f32
      %20 = vector.broadcast %cst_15 : f32 to vector<2x4xf32>
      %21 = arith.mulf %19, %20 : vector<2x4xf32>
      %c0_16 = arith.constant 0 : index
      %c0_17 = arith.constant 0 : index
      %22 = vector.load %arg5[%c0_16, %c0_17] : memref<4x8xf32, #tpu.memory_space<vmem>>, vector<4x8xf32>
      %cst_18 = arith.constant dense<0.000000e+00> : vector<2x8xf32>
      %23 = tpu.matmul %21, %22, %cst_18 {dimension_numbers = #tpu.dot_dimension_numbers<[1], [0], [0], [1], [0, 0, 1, 1], [], []>} : vector<2x4xf32>, vector<4x8xf32>, vector<2x8xf32> -> vector<2x8xf32>
      %c0_19 = arith.constant 0 : index
      %c0_20 = arith.constant 0 : index
      %24 = vector.load %arg6[%c0_19, %c0_20] : memref<1x8xf32, #tpu.memory_space<vmem>>, vector<1x8xf32>
      %25 = vector.broadcast %24 : vector<1x8xf32> to vector<2x8xf32>
      %26 = arith.addf %23, %25 : vector<2x8xf32>
      %c0_21 = arith.constant 0 : index
      %c0_22 = arith.constant 0 : index
      %27 = vector.load %arg7[%c0_21, %c0_22] : memref<2x8xf32, #tpu.memory_space<vmem>>, vector<2x8xf32>
      tpu.vector_store %arg7[%c0_21, %c0_22], %26 {strides = array<i32>} : memref<2x8xf32, #tpu.memory_space<vmem>>, vector<2x8xf32>,
    } else {
    }
    return
  }
  func.func @transform_0(%arg0: i32, %arg1: i32) -> (i32, i32, i32) {
    %c0_i32 = arith.constant 0 : i32
    %c0_i32_0 = arith.constant 0 : i32
    return %arg0, %c0_i32, %arg1 : i32, i32, i32
  }
  func.func @transform_1(%arg0: i32, %arg1: i32) -> (i32, i32) {
    %c0_i32 = arith.constant 0 : i32
    %c0_i32_0 = arith.constant 0 : i32
    %c0_i32_1 = arith.constant 0 : i32
    return %c0_i32, %c0_i32_0 : i32, i32
  }
  func.func @transform_2(%arg0: i32, %arg1: i32) -> (i32, i32) {
    %c0_i32 = arith.constant 0 : i32
    %c0_i32_0 = arith.constant 0 : i32
    %c0_i32_1 = arith.constant 0 : i32
    return %c0_i32, %c0_i32_0 : i32, i32
  }
  func.func @transform_3(%arg0: i32, %arg1: i32) -> (i32, i32) {
    %c0_i32 = arith.constant 0 : i32
    %c0_i32_0 = arith.constant 0 : i32
    %c0_i32_1 = arith.constant 0 : i32
    return %c0_i32, %c0_i32_0 : i32, i32
  }
  func.func @transform_4(%arg0: i32, %arg1: i32) -> (i32, i32) {
    %c0_i32 = arith.constant 0 : i32
    %c0_i32_0 = arith.constant 0 : i32
    %c0_i32_1 = arith.constant 0 : i32
    return %c0_i32, %c0_i32_0 : i32, i32
  }
  func.func @transform_5(%arg0: i32, %arg1: i32) -> (i32, i32) {
    %c0_i32 = arith.constant 0 : i32
    %c0_i32_0 = arith.constant 0 : i32
    return %arg0, %c0_i32 : i32, i32
  }
}

</mosaic_0001>

<llo_original>
// kernel: tpu_custom_call.1
$region0: #{tpu_custom_call.1}
  #allocation0 [shape = 'u32[]', space=smem, size = 0x4, offset = 0x4, fixed_abs, tag = 'smem constant byte address 0x4 - core index']
  #allocation1 [shape = 'u32[72,128]{1,0:T(1,128)}', space=vmem, size = 0x9000, scoped, tag = 'internal scratch']
  #allocation2 [shape = 'f32[2,4]{1,0:T(2,128)}', space=vmem, size = 0x400, scoped, tag = 'scratch operand']
  %s0 = inlined_call_operand.hbm [shape: f32[2,4,256], index: 0, kind: input, shape index: {}]
  %s1 = inlined_call_operand.vmem [shape: f32[4,1], index: 1, kind: input, shape index: {}]
  %s2 = inlined_call_operand.vmem [shape: f32[4,1], index: 2, kind: input, shape index: {}]
  %s3 = inlined_call_operand.vmem [shape: f32[4,8], index: 3, kind: input, shape index: {}]
  %s4 = inlined_call_operand.vmem [shape: f32[1,8], index: 4, kind: input, shape index: {}]
  %s5 = inlined_call_operand.hbm [shape: f32[2,8], index: 5, kind: output, shape index: {}]
  %s6 = sld [smem:[#allocation0]]
  $region42: #{tpu_custom_call.1} parent=0
    _
  %s8 = ssub.s32 1, %s6
  %s9 = scalar_select 0, %s8, %s6
  $region1: #{tpu_custom_call.1} parent=0
    #allocation3 [shape = 'u8[8192]{0}', space=vmem, size = 0x2000, scoped, tag = 'input window, operand 0, single buffered']
    #allocation4 [shape = 's32[1]{0}', space=sflag, size = 0x4, scoped, tag = 'scoped memory for tpu_custom_call.1']
    #allocation5 [shape = 's32[1]{0}', space=sflag, size = 0x4, scoped, tag = 'scoped memory for tpu_custom_call.1']
    #allocation6 [shape = 'u8[1024]{0}', space=vmem, size = 0x400, scoped, tag = 'output window, operand 0, single buffered']
    %10 = vsyncpa [#allocation4], 0
    %11 = vsyncpa [#allocation5], 0
    // Predicated region
    $region2: #{tpu_custom_call.1} parent=1 // pred_check
      _
    $region3: #{tpu_custom_call.1} parent=1 // pred_check_branch
      %13 = sbr.rel (0) target = $region5
    $region4: #{tpu_custom_call.1} parent=1 // pred_region
      %15 = vsyncadd [#allocation4], 0
      %s16 = sshll.u32 %s0, 4
      %s17 = int_to_ptr.hbm [resolvable:$true] %s16
      %s18 = sshll.u32 [#allocation3], 4
      %s19 = int_to_ptr.vmem [resolvable:$true] %s18
      %24 = dma.hbm_to_vmem [thread:$0]  %s17, 256, %s19, [#allocation4], 128, 128, 8
    $region5: #{tpu_custom_call.1} parent=1 // pred_fallthru
      _
    // Predicated region
    $region6: #{tpu_custom_call.1} parent=1 // pred_check
      _
    $region7: #{tpu_custom_call.1} parent=1 // pred_check_branch
      %26 = sbr.rel (0) target = $region9
    $region8: #{tpu_custom_call.1} parent=1 // pred_region
      _
    $region9: #{tpu_custom_call.1} parent=1 // pred_fallthru
      _
    // Predicated region
    $region10: #{tpu_custom_call.1} parent=1 // pred_check
      _
    $region11: #{tpu_custom_call.1} parent=1 // pred_check_branch
      %28 = sbr.rel (0) target = $region13
    $region12: #{tpu_custom_call.1} parent=1 // pred_region
      _
    $region13: #{tpu_custom_call.1} parent=1 // pred_fallthru
      _
    // Predicated region
    $region14: #{tpu_custom_call.1} parent=1 // pred_check
      _
    $region15: #{tpu_custom_call.1} parent=1 // pred_check_branch
      %30 = sbr.rel (0) target = $region17
    $region16: #{tpu_custom_call.1} parent=1 // pred_region
      _
    $region17: #{tpu_custom_call.1} parent=1 // pred_fallthru
      _
    // Predicated region
    $region18: #{tpu_custom_call.1} parent=1 // pred_check
      _
    $region19: #{tpu_custom_call.1} parent=1 // pred_check_branch
      %32 = sbr.rel (0) target = $region21
    $region20: #{tpu_custom_call.1} parent=1 // pred_region
      _
    $region21: #{tpu_custom_call.1} parent=1 // pred_fallthru
      _
    // Predicated region
    $region22: #{tpu_custom_call.1} parent=1 // pred_check
      _
    $region23: #{tpu_custom_call.1} parent=1 // pred_check_branch
      %34 = sbr.rel (0) target = $region25
    $region24: #{tpu_custom_call.1} parent=1 // pred_region
      %36 = dma.done [#allocation4], 256
    $region25: #{tpu_custom_call.1} parent=1 // pred_fallthru
      _
    %p37 = scmp.eq.s32.totalorder 0, 0
    // Predicated region
    $region26: #{tpu_custom_call.1} parent=1 // pred_check
      %p38 = pneg %p37
    $region27: #{tpu_custom_call.1} parent=1 // pred_check_branch
      %40 = sbr.rel (%p38) target = $region29
    $region28: #{tpu_custom_call.1} parent=1 // pred_region
      %vm41 = vcmask 25600
      %42 = vst.msk [vmem:[#allocation2] sm:$0x3] %vm41, 0.0
    $region29: #{tpu_custom_call.1} parent=1 // pred_fallthru
      _
    %v43 = vld [vmem:[#allocation3] sm:$0xff]
    %v44 = vld [vmem:[#allocation3 + $0x8] sm:$0xff]
    %v45 = vld [vmem:[%s1] sm:$0xf]
    %47 = vset.pattern.permute.xlu0 0
    %48 = vperm.xlu0 %47, %v45
    %v49 = vpop.permute.xlu0 %48
    %v51 = vunpack.c.l.s4 839922192
    %v52 = vunpack.c.0.s8 %v51
    %v53 = vperm.slane %v49, %v52
    %v55 = vmul.f32 %v43, %v53
    %v56 = vmul.f32 %v44, %v53
    %v57 = vld [vmem:[%s2] sm:$0xf]
    %59 = vset.pattern.permute.xlu0 0
    %60 = vperm.xlu0 %59, %v57
    %v61 = vpop.permute.xlu0 %60
    %v63 = vunpack.c.l.s4 839922192
    %v64 = vunpack.c.0.s8 %v63
    %v65 = vperm.slane %v61, %v64
    %v67 = vadd.f32 %v55, %v65
    %v68 = vadd.f32 %v56, %v65
    %v69 = vld [vmem:[#allocation2] sm:$0x3]
    %72 = vst [vmem:[#allocation1] ss:$2 sm:$0xff] %v67
    %v73 = vld.sshfl [vmem:[#allocation1] sm:$0xff pattern:$0x75316420]
    %v74 = vld.sshfl [vmem:[#allocation1 + $0x8] sm:$0xff pattern:$0x75316420]
    %s75 = scalar_lea.vmem [#allocation1], 16
    %76 = vst [vmem:[%s75] ss:$2 sm:$0xff] %v68
    %v77 = vld.sshfl [vmem:[#allocation1 + $0x10] sm:$0xff pattern:$0x75316420]
    %v78 = vld.sshfl [vmem:[#allocation1 + $0x18] sm:$0xff pattern:$0x75316420]
    %vm83 = vcmask 1043456
    %v84 = vsel %vm83, %v73, 0.0
    %v85 = vsel %vm83, %v74, 0.0
    %v86 = vadd.f32 %v84, %v85
    %87 = vadd.xlane.f32.xlu0 %v86
    %v88 = vpop.xlane.xlu0 %87
    %v89 = vsel %vm83, %v77, 0.0
    %v90 = vsel %vm83, %v78, 0.0
    %v91 = vadd.f32 %v89, %v90
    %92 = vadd.xlane.f32.xlu0 %v91
    %v93 = vpop.xlane.xlu0 %92
    %v96 = vlaneseq
    %v97 = vand.u32 %v96, 127
    %v98 = vperm.slane %v88, %v97
    %v99 = vperm.slane %v93, %v97
    %vm100 = vcmask 1041409
    %v101 = vsel %vm100, %v99, %v98
    %v103 = vadd.f32 %v69, %v101
    %vm104 = vcmask 25600
    %105 = vst.msk [vmem:[#allocation2] sm:$0x3] %vm104, %v103
    // Predicated region
    $region30: #{tpu_custom_call.1} parent=1 // pred_check
      %p106 = pneg %p37
    $region31: #{tpu_custom_call.1} parent=1 // pred_check_branch
      %108 = sbr.rel (%p106) target = $region33
    $region32: #{tpu_custom_call.1} parent=1 // pred_region
      %v109 = vld [vmem:[#allocation2] sm:$0x3]
      %v110 = vmul.f32 %v109, 0.00390625
      %v111 = vld [vmem:[%s3] sm:$0xf]
      %v112 = vld [vmem:[%s4] sm:$0x1]
      %v114 = vperm.slane %v112, 0
      %vm116 = vcmask 31744
      %v118 = vsel %vm116, %v110, 0
      %v121 = vsel %vm83, %v111, 0
      %123 = vmatpush.msra.mxu0 0.0
      %124 = vmatpush.msra.mxu0 0.0
      %125 = vmatpush.msra.mxu0 0.0
      %126 = vmatpush.msra.mxu0 0.0
      %127 = vmatpush.msra.mxu0 0.0
      %128 = vmatpush.msra.mxu0 0.0
      %129 = vmatpush.msra.mxu0 0.0
      %130 = vmatpush.msra.mxu0 0.0
      %131 = vmatpush.msra.mxu0 0.0
      %132 = vmatpush.msra.mxu0 0.0
      %133 = vmatpush.msra.mxu0 0.0
      %134 = vmatpush.msra.mxu0 0.0
      %135 = vmatpush.msra.mxu0 0.0
      %136 = vmatpush.msra.mxu0 0.0
      %137 = vmatpush.msra.mxu0 0.0
      %138 = vmatpush.msra.mxu0 %v121
      %139 = vmatmul.f32.gmra.mxu0 %v118
      %v140 = vpop.f32.mrf.mxu0
      %v141 = vadd.f32 %v114, %v140
      %142 = vdwg.mxu0
      %vm143 = vcmask 58368
      %144 = vst.msk [vmem:[#allocation6] sm:$0x3] %vm143, %v141
    $region33: #{tpu_custom_call.1} parent=1 // pred_fallthru
      _
    // Predicated region
    $region34: #{tpu_custom_call.1} parent=1 // pred_check
      _
    $region35: #{tpu_custom_call.1} parent=1 // pred_check_branch
      %146 = sbr.rel (0) target = $region37
    $region36: #{tpu_custom_call.1} parent=1 // pred_region
      %148 = vsyncadd [#allocation5], 0
      %s150 = sshll.u32 [#allocation6], 4
      %s151 = int_to_ptr.vmem [resolvable:$true] %s150
      %s152 = sshll.u32 %s5, 4
      %s153 = int_to_ptr.hbm [resolvable:$true] %s152
      %155 = dma.vmem_to_hbm [thread:$0]  %s151, 32, %s153, [#allocation5]
    $region37: #{tpu_custom_call.1} parent=1 // pred_fallthru
      _
    // Predicated region
    $region38: #{tpu_custom_call.1} parent=1 // pred_check
      _
    $region39: #{tpu_custom_call.1} parent=1 // pred_check_branch
      %157 = sbr.rel (0) target = $region41
    $region40: #{tpu_custom_call.1} parent=1 // pred_region
      %159 = dma.done [#allocation5], 32
    $region41: #{tpu_custom_call.1} parent=1 // pred_fallthru
      _
    %160 = vsyncpa [#allocation4], 1
    %161 = vsyncpa [#allocation5], 1

</llo_original>
